<compile_context>
chip_gen: v7x
topology: tpu7x:2x2x1
jax: 0.10.0
libtpu: 0.0.40
codegen_flags: <defaults>
</compile_context>

<pallas_src>
import jax
import jax.numpy as jnp
from jax.experimental import pallas as pl
from jax.experimental.pallas import tpu as pltpu

_LANE = 128


def _round_up(n, m):
    return ((n + m - 1) // m) * m


def _mlp_kernel(x_ref, w1_ref, b1_ref, w2_ref, b2_ref, w3_ref, b3_ref, o_ref):
    """One batch tile of the fused 3-layer MLP (transposed orientation).

    x_ref  : (obs_p, TM)  bf16   features on sublanes, batch on lanes (streamed)
    w1_ref : (H, obs_p)   bf16   resident
    b1_ref : (H, 1)       f32    resident
    w2_ref : (H, H)       bf16   resident
    b2_ref : (H, 1)       f32    resident
    w3_ref : (H, 1)       f32    resident
    b3_ref : (1, 1)       f32    resident
    o_ref  : (1, TM)      f32    lane-dense rewards for this tile
    """
    # Layer 1: (H, obs_p) @ (obs_p, TM) -> (H, TM), bf16 MXU, f32 accumulate.
    h1 = jnp.dot(w1_ref[...], x_ref[...], preferred_element_type=jnp.float32)
    h1 = jnp.maximum(h1 + b1_ref[...], 0.0)

    # Layer 2: (H, H) @ (H, TM) -> (H, TM).
    h2 = jnp.dot(w2_ref[...], h1.astype(jnp.bfloat16),
                 preferred_element_type=jnp.float32)
    h2 = jnp.maximum(h2 + b2_ref[...], 0.0)

    # Layer 3 (out_features == 1): VPU multiply + sublane reduction instead of
    # an N=1 MXU matmul.  Result lands naturally along lanes -> (1, TM).
    r = jnp.sum(h2 * w3_ref[...], axis=0, keepdims=True) + b3_ref[...]
    o_ref[...] = r.astype(o_ref.dtype)


def rlhf_reward_model_forward(x, params, *, block_rows=1024):
    """Forward pass of RLHFRewardModel via a batch-tiled fused Pallas kernel.

    x: (batch, obs_shape) float32
    params: dict with w1 (obs,H), b1 (H,), w2 (H,H), b2 (H,), w3 (H,1), b3 (1,)
    returns: (batch, 1) float32
    """
    batch, obs = x.shape
    hidden = params["w2"].shape[0]
    obs_p = _round_up(obs, _LANE)

    block_rows = _round_up(block_rows, _LANE)
    tm = min(block_rows, _round_up(batch, _LANE))
    batch_p = _round_up(batch, tm)
    num_tiles = batch_p // tm

    # One-time layout prep (fused by XLA): pad obs -> obs_p, pad batch -> batch_p,
    # transpose so batch sits on lanes, cast MXU operands to bf16.
    xT = jnp.pad(x, ((0, batch_p - batch), (0, obs_p - obs))).T.astype(jnp.bfloat16)
    w1T = jnp.pad(params["w1"], ((0, obs_p - obs), (0, 0))).T.astype(jnp.bfloat16)
    w2T = params["w2"].T.astype(jnp.bfloat16)
    b1c = params["b1"].reshape(hidden, 1).astype(jnp.float32)
    b2c = params["b2"].reshape(hidden, 1).astype(jnp.float32)
    w3c = params["w3"].reshape(hidden, 1).astype(jnp.float32)
    b3c = params["b3"].reshape(1, 1).astype(jnp.float32)

    out = pl.pallas_call(
        _mlp_kernel,
        out_shape=jax.ShapeDtypeStruct((1, batch_p), jnp.float32),
        grid=(num_tiles,),
        in_specs=[
            pl.BlockSpec((obs_p, tm), lambda i: (0, i)),       # x tile: streamed
            pl.BlockSpec((hidden, obs_p), lambda i: (0, 0)),   # weights: resident
            pl.BlockSpec((hidden, 1), lambda i: (0, 0)),
            pl.BlockSpec((hidden, hidden), lambda i: (0, 0)),
            pl.BlockSpec((hidden, 1), lambda i: (0, 0)),
            pl.BlockSpec((hidden, 1), lambda i: (0, 0)),
            pl.BlockSpec((1, 1), lambda i: (0, 0)),
        ],
        out_specs=pl.BlockSpec((1, tm), lambda i: (0, i)),     # lane-dense rewards
        compiler_params=pltpu.CompilerParams(
            dimension_semantics=("parallel",),  # shard batch tiles across TCs (v7x)
        ),
    )(xT, w1T, b1c, w2T, b2c, w3c, b3c)

    return out[0, :batch].reshape(batch, 1)


def init_params(key, obs_shape=17, hidden=256):
    """Deterministic init mimicking nn.Linear's U(-1/sqrt(fan_in), +1/sqrt(fan_in))."""
    ks = jax.random.split(key, 6)

    def lin(kw, kb, fan_in, fan_out):
        bound = 1.0 / jnp.sqrt(jnp.float32(fan_in))
        w = jax.random.uniform(kw, (fan_in, fan_out), jnp.float32, -bound, bound)
        b = jax.random.uniform(kb, (fan_out,), jnp.float32, -bound, bound)
        return w, b

    w1, b1 = lin(ks[0], ks[1], obs_shape, hidden)
    w2, b2 = lin(ks[2], ks[3], hidden, hidden)
    w3, b3 = lin(ks[4], ks[5], hidden, 1)
    return {"w1": w1, "b1": b1, "w2": w2, "b2": b2, "w3": w3, "b3": b3}


def _reference_forward(x, p):
    """Pure-JAX f32 reference matching the PyTorch forward()."""
    h1 = jnp.maximum(x @ p["w1"] + p["b1"], 0.0)
    h2 = jnp.maximum(h1 @ p["w2"] + p["b2"], 0.0)
    return h2 @ p["w3"] + p["b3"]


if __name__ == "__main__":
    key = jax.random.PRNGKey(0)
    k_param, k_x = jax.random.split(key)

    obs_shape = 17
    batch = 8
    params = init_params(k_param, obs_shape=obs_shape, hidden=256)
    x = jax.random.normal(k_x, (batch, obs_shape), dtype=jnp.float32)

    out = rlhf_reward_model_forward(x, params)
    out = jax.block_until_ready(out)

    ref = _reference_forward(x, params)
    assert out.shape == (batch, 1)
    # bf16 matmul inputs with f32 accumulation vs the pure-f32 reference.
    assert jnp.allclose(out, ref, atol=3e-2, rtol=3e-2)

    print("KERNEL_OK")
</pallas_src>

<mosaic_0001>
module attributes {stable_mosaic.version = 11 : i64} {
  func.func @_mlp_kernel(%arg0: i32, %arg1: memref<128x128xbf16, #tpu.memory_space<vmem>>, %arg2: memref<256x128xbf16, #tpu.memory_space<vmem>>, %arg3: memref<256x1xf32, #tpu.memory_space<vmem>>, %arg4: memref<256x256xbf16, #tpu.memory_space<vmem>>, %arg5: memref<256x1xf32, #tpu.memory_space<vmem>>, %arg6: memref<256x1xf32, #tpu.memory_space<vmem>>, %arg7: memref<1x1xf32, #tpu.memory_space<vmem>>, %arg8: memref<1x128xf32, #tpu.memory_space<vmem>>) attributes {dimension_semantics = [#tpu.dimension_semantics<parallel>], iteration_bounds = array<i64: 1>, scalar_prefetch = 0 : i64, scratch_operands = 0 : i64, tpu.core_type = #tpu.core_type<tc>, window_params = [{transform_indices = @transform_0, window_bounds = array<i64: 128, 128>}, {pipeline_mode = #tpu.pipeline_mode<synchronous>, transform_indices = @transform_1, window_bounds = array<i64: 256, 128>}, {pipeline_mode = #tpu.pipeline_mode<synchronous>, transform_indices = @transform_2, window_bounds = array<i64: 256, 1>}, {pipeline_mode = #tpu.pipeline_mode<synchronous>, transform_indices = @transform_3, window_bounds = array<i64: 256, 256>}, {pipeline_mode = #tpu.pipeline_mode<synchronous>, transform_indices = @transform_4, window_bounds = array<i64: 256, 1>}, {pipeline_mode = #tpu.pipeline_mode<synchronous>, transform_indices = @transform_5, window_bounds = array<i64: 256, 1>}, {pipeline_mode = #tpu.pipeline_mode<synchronous>, transform_indices = @transform_6, window_bounds = array<i64: 1, 1>}, {transform_indices = @transform_7, window_bounds = array<i64: 1, 128>}]} {
    %c0 = arith.constant 0 : index
    %c0_0 = arith.constant 0 : index
    %0 = vector.load %arg2[%c0, %c0_0] : memref<256x128xbf16, #tpu.memory_space<vmem>>, vector<256x128xbf16>
    %c0_1 = arith.constant 0 : index
    %c0_2 = arith.constant 0 : index
    %1 = vector.load %arg1[%c0_1, %c0_2] : memref<128x128xbf16, #tpu.memory_space<vmem>>, vector<128x128xbf16>
    %cst = arith.constant dense<0.000000e+00> : vector<256x128xf32>
    %2 = tpu.matmul %0, %1, %cst {dimension_numbers = #tpu.dot_dimension_numbers<[1], [0], [0], [1], [0, 0, 1, 1], [], []>} : vector<256x128xbf16>, vector<128x128xbf16>, vector<256x128xf32> -> vector<256x128xf32>
    %c0_3 = arith.constant 0 : index
    %c0_4 = arith.constant 0 : index
    %3 = vector.load %arg3[%c0_3, %c0_4] : memref<256x1xf32, #tpu.memory_space<vmem>>, vector<256x1xf32>
    %4 = vector.broadcast %3 : vector<256x1xf32> to vector<256x128xf32>
    %5 = arith.addf %2, %4 : vector<256x128xf32>
    %cst_5 = arith.constant 0.000000e+00 : f32
    %6 = vector.broadcast %cst_5 : f32 to vector<256x128xf32>
    %7 = arith.maximumf %5, %6 : vector<256x128xf32>
    %c0_6 = arith.constant 0 : index
    %c0_7 = arith.constant 0 : index
    %8 = vector.load %arg4[%c0_6, %c0_7] : memref<256x256xbf16, #tpu.memory_space<vmem>>, vector<256x256xbf16>
    %9 = arith.truncf %7 : vector<256x128xf32> to vector<256x128xbf16>
    %cst_8 = arith.constant dense<0.000000e+00> : vector<256x128xf32>
    %10 = tpu.matmul %8, %9, %cst_8 {dimension_numbers = #tpu.dot_dimension_numbers<[1], [0], [0], [1], [0, 0, 1, 1], [], []>} : vector<256x256xbf16>, vector<256x128xbf16>, vector<256x128xf32> -> vector<256x128xf32>
    %c0_9 = arith.constant 0 : index
    %c0_10 = arith.constant 0 : index
    %11 = vector.load %arg5[%c0_9, %c0_10] : memref<256x1xf32, #tpu.memory_space<vmem>>, vector<256x1xf32>
    %12 = vector.broadcast %11 : vector<256x1xf32> to vector<256x128xf32>
    %13 = arith.addf %10, %12 : vector<256x128xf32>
    %cst_11 = arith.constant 0.000000e+00 : f32
    %14 = vector.broadcast %cst_11 : f32 to vector<256x128xf32>
    %15 = arith.maximumf %13, %14 : vector<256x128xf32>
    %c0_12 = arith.constant 0 : index
    %c0_13 = arith.constant 0 : index
    %16 = vector.load %arg6[%c0_12, %c0_13] : memref<256x1xf32, #tpu.memory_space<vmem>>, vector<256x1xf32>
    %17 = vector.broadcast %16 : vector<256x1xf32> to vector<256x128xf32>
    %18 = arith.mulf %15, %17 : vector<256x128xf32>
    %cst_14 = arith.constant dense<0.000000e+00> : vector<128xf32>
    %19 = vector.multi_reduction <add>, %18, %cst_14 [0] : vector<256x128xf32> to vector<128xf32>
    %20 = vector.shape_cast %19 : vector<128xf32> to vector<1x128xf32>
    %c0_15 = arith.constant 0 : index
    %c0_16 = arith.constant 0 : index
    %21 = vector.load %arg7[%c0_15, %c0_16] : memref<1x1xf32, #tpu.memory_space<vmem>>, vector<1x1xf32>
    %22 = vector.broadcast %21 : vector<1x1xf32> to vector<1x128xf32>
    %23 = arith.addf %20, %22 : vector<1x128xf32>
    %c0_17 = arith.constant 0 : index
    %c0_18 = arith.constant 0 : index
    %24 = vector.load %arg8[%c0_17, %c0_18] : memref<1x128xf32, #tpu.memory_space<vmem>>, vector<1x128xf32>
    tpu.vector_store %arg8[%c0_17, %c0_18], %23 {strides = array<i32>} : memref<1x128xf32, #tpu.memory_space<vmem>>, vector<1x128xf32>,
    return
  }
  func.func @transform_0(%arg0: i32) -> (i32, i32) {
    %c0_i32 = arith.constant 0 : i32
    %c0_i32_0 = arith.constant 0 : i32
    return %c0_i32, %arg0 : i32, i32
  }
  func.func @transform_1(%arg0: i32) -> (i32, i32) {
    %c0_i32 = arith.constant 0 : i32
    %c0_i32_0 = arith.constant 0 : i32
    %c0_i32_1 = arith.constant 0 : i32
    return %c0_i32, %c0_i32_0 : i32, i32
  }
  func.func @transform_2(%arg0: i32) -> (i32, i32) {
    %c0_i32 = arith.constant 0 : i32
    %c0_i32_0 = arith.constant 0 : i32
    %c0_i32_1 = arith.constant 0 : i32
    return %c0_i32, %c0_i32_0 : i32, i32
  }
  func.func @transform_3(%arg0: i32) -> (i32, i32) {
    %c0_i32 = arith.constant 0 : i32
    %c0_i32_0 = arith.constant 0 : i32
    %c0_i32_1 = arith.constant 0 : i32
    return %c0_i32, %c0_i32_0 : i32, i32
  }
  func.func @transform_4(%arg0: i32) -> (i32, i32) {
    %c0_i32 = arith.constant 0 : i32
    %c0_i32_0 = arith.constant 0 : i32
    %c0_i32_1 = arith.constant 0 : i32
    return %c0_i32, %c0_i32_0 : i32, i32
  }
  func.func @transform_5(%arg0: i32) -> (i32, i32) {
    %c0_i32 = arith.constant 0 : i32
    %c0_i32_0 = arith.constant 0 : i32
    %c0_i32_1 = arith.constant 0 : i32
    return %c0_i32, %c0_i32_0 : i32, i32
  }
  func.func @transform_6(%arg0: i32) -> (i32, i32) {
    %c0_i32 = arith.constant 0 : i32
    %c0_i32_0 = arith.constant 0 : i32
    %c0_i32_1 = arith.constant 0 : i32
    return %c0_i32, %c0_i32_0 : i32, i32
  }
  func.func @transform_7(%arg0: i32) -> (i32, i32) {
    %c0_i32 = arith.constant 0 : i32
    %c0_i32_0 = arith.constant 0 : i32
    return %c0_i32, %arg0 : i32, i32
  }
}

</mosaic_0001>

<llo_original>
// kernel: tpu_custom_call.1
$region0: #{tpu_custom_call.1}
  #allocation0 [shape = 'u32[]', space=smem, size = 0x4, offset = 0x4, fixed_abs, tag = 'smem constant byte address 0x4 - core index']
  #allocation1 [shape = 'u32[144,128]{1,0:T(1,128)}', space=vmem, size = 0x12000, scoped, tag = 'internal scratch']
  #allocation2 [shape = 'f32[1,1]{1,0:T(1,128)S(1)}', space=vmem, size = 0x200, scoped, tag = 'scoped memory for tpu_custom_call.1']
  %s0 = inlined_call_operand.vmem [shape: bf16[128,128], index: 0, kind: input, shape index: {}]
  %s1 = inlined_call_operand.vmem [shape: bf16[256,128], index: 1, kind: input, shape index: {}]
  %s2 = inlined_call_operand.vmem [shape: f32[256,1], index: 2, kind: input, shape index: {}]
  %s3 = inlined_call_operand.vmem [shape: bf16[256,256], index: 3, kind: input, shape index: {}]
  %s4 = inlined_call_operand.vmem [shape: f32[256,1], index: 4, kind: input, shape index: {}]
  %s5 = inlined_call_operand.vmem [shape: f32[256,1], index: 5, kind: input, shape index: {}]
  %s6 = inlined_call_operand.<no memory space> [shape: f32[1,1], index: 6, kind: input, shape index: {}]
  %s7 = inlined_call_operand.hbm [shape: f32[1,128], index: 7, kind: output, shape index: {}]
  %s8 = sld [smem:[#allocation0]]
  $region38: #{tpu_custom_call.1} parent=0
    _
  %s10 = ssub.s32 1, %s8
  %s11 = scalar_select 0, %s10, %s8
  %v12 = vstv %s6
  %13 = vst [vmem:[#allocation2] sm:$0x1] %v12
  $region1: #{tpu_custom_call.1} parent=0
    #allocation3 [shape = 'u8[512]{0}', space=vmem, size = 0x400, scoped, tag = 'output window, operand 0, single buffered']
    #allocation4 [shape = 's32[1]{0}', space=sflag, size = 0x4, scoped, tag = 'scoped memory for tpu_custom_call.1']
    %14 = vsyncpa [#allocation4], 0
    // Predicated region
    $region2: #{tpu_custom_call.1} parent=1 // pred_check
      _
    $region3: #{tpu_custom_call.1} parent=1 // pred_check_branch
      %16 = sbr.rel (0) target = $region5
    $region4: #{tpu_custom_call.1} parent=1 // pred_region
      _
    $region5: #{tpu_custom_call.1} parent=1 // pred_fallthru
      _
    // Predicated region
    $region6: #{tpu_custom_call.1} parent=1 // pred_check
      _
    $region7: #{tpu_custom_call.1} parent=1 // pred_check_branch
      %18 = sbr.rel (0) target = $region9
    $region8: #{tpu_custom_call.1} parent=1 // pred_region
      _
    $region9: #{tpu_custom_call.1} parent=1 // pred_fallthru
      _
    // Predicated region
    $region10: #{tpu_custom_call.1} parent=1 // pred_check
      _
    $region11: #{tpu_custom_call.1} parent=1 // pred_check_branch
      %20 = sbr.rel (0) target = $region13
    $region12: #{tpu_custom_call.1} parent=1 // pred_region
      _
    $region13: #{tpu_custom_call.1} parent=1 // pred_fallthru
      _
    // Predicated region
    $region14: #{tpu_custom_call.1} parent=1 // pred_check
      _
    $region15: #{tpu_custom_call.1} parent=1 // pred_check_branch
      %22 = sbr.rel (0) target = $region17
    $region16: #{tpu_custom_call.1} parent=1 // pred_region
      _
    $region17: #{tpu_custom_call.1} parent=1 // pred_fallthru
      _
    // Predicated region
    $region18: #{tpu_custom_call.1} parent=1 // pred_check
      _
    $region19: #{tpu_custom_call.1} parent=1 // pred_check_branch
      %24 = sbr.rel (0) target = $region21
    $region20: #{tpu_custom_call.1} parent=1 // pred_region
      _
    $region21: #{tpu_custom_call.1} parent=1 // pred_fallthru
      _
    // Predicated region
    $region22: #{tpu_custom_call.1} parent=1 // pred_check
      _
    $region23: #{tpu_custom_call.1} parent=1 // pred_check_branch
      %26 = sbr.rel (0) target = $region25
    $region24: #{tpu_custom_call.1} parent=1 // pred_region
      _
    $region25: #{tpu_custom_call.1} parent=1 // pred_fallthru
      _
    // Predicated region
    $region26: #{tpu_custom_call.1} parent=1 // pred_check
      _
    $region27: #{tpu_custom_call.1} parent=1 // pred_check_branch
      %28 = sbr.rel (0) target = $region29
    $region28: #{tpu_custom_call.1} parent=1 // pred_region
      _
    $region29: #{tpu_custom_call.1} parent=1 // pred_fallthru
      _
    %v30 = vld [vmem:[%s1] sm:$0xf]
    %v31 = vld [vmem:[%s1 + $0x4] sm:$0xf]
    %v32 = vld [vmem:[%s1 + $0x8] sm:$0xf]
    %v33 = vld [vmem:[%s1 + $0xc] sm:$0xf]
    %v34 = vld [vmem:[%s1 + $0x10] sm:$0xf]
    %v35 = vld [vmem:[%s1 + $0x14] sm:$0xf]
    %v36 = vld [vmem:[%s1 + $0x18] sm:$0xf]
    %v37 = vld [vmem:[%s1 + $0x1c] sm:$0xf]
    %v38 = vld [vmem:[%s1 + $0x20] sm:$0xf]
    %v39 = vld [vmem:[%s1 + $0x24] sm:$0xf]
    %v40 = vld [vmem:[%s1 + $0x28] sm:$0xf]
    %v41 = vld [vmem:[%s1 + $0x2c] sm:$0xf]
    %v42 = vld [vmem:[%s1 + $0x30] sm:$0xf]
    %v43 = vld [vmem:[%s1 + $0x34] sm:$0xf]
    %v44 = vld [vmem:[%s1 + $0x38] sm:$0xf]
    %v45 = vld [vmem:[%s1 + $0x3c] sm:$0xf]
    %v46 = vld [vmem:[%s1 + $0x40] sm:$0xf]
    %v47 = vld [vmem:[%s1 + $0x44] sm:$0xf]
    %v48 = vld [vmem:[%s1 + $0x48] sm:$0xf]
    %v49 = vld [vmem:[%s1 + $0x4c] sm:$0xf]
    %v50 = vld [vmem:[%s1 + $0x50] sm:$0xf]
    %v51 = vld [vmem:[%s1 + $0x54] sm:$0xf]
    %v52 = vld [vmem:[%s1 + $0x58] sm:$0xf]
    %v53 = vld [vmem:[%s1 + $0x5c] sm:$0xf]
    %v54 = vld [vmem:[%s1 + $0x60] sm:$0xf]
    %v55 = vld [vmem:[%s1 + $0x64] sm:$0xf]
    %v56 = vld [vmem:[%s1 + $0x68] sm:$0xf]
    %v57 = vld [vmem:[%s1 + $0x6c] sm:$0xf]
    %v58 = vld [vmem:[%s1 + $0x70] sm:$0xf]
    %v59 = vld [vmem:[%s1 + $0x74] sm:$0xf]
    %v60 = vld [vmem:[%s1 + $0x78] sm:$0xf]
    %v61 = vld [vmem:[%s1 + $0x7c] sm:$0xf]
    %v62 = vld [vmem:[%s0] sm:$0xf]
    %v63 = vld [vmem:[%s0 + $0x4] sm:$0xf]
    %v64 = vld [vmem:[%s0 + $0x8] sm:$0xf]
    %v65 = vld [vmem:[%s0 + $0xc] sm:$0xf]
    %v66 = vld [vmem:[%s0 + $0x10] sm:$0xf]
    %v67 = vld [vmem:[%s0 + $0x14] sm:$0xf]
    %v68 = vld [vmem:[%s0 + $0x18] sm:$0xf]
    %v69 = vld [vmem:[%s0 + $0x1c] sm:$0xf]
    %v70 = vld [vmem:[%s0 + $0x20] sm:$0xf]
    %v71 = vld [vmem:[%s0 + $0x24] sm:$0xf]
    %v72 = vld [vmem:[%s0 + $0x28] sm:$0xf]
    %v73 = vld [vmem:[%s0 + $0x2c] sm:$0xf]
    %v74 = vld [vmem:[%s0 + $0x30] sm:$0xf]
    %v75 = vld [vmem:[%s0 + $0x34] sm:$0xf]
    %v76 = vld [vmem:[%s0 + $0x38] sm:$0xf]
    %v77 = vld [vmem:[%s0 + $0x3c] sm:$0xf]
    %v78 = vld [vmem:[%s2] sm:$0xff]
    %v79 = vld [vmem:[%s2 + $0x8] sm:$0xff]
    %v80 = vld [vmem:[%s2 + $0x10] sm:$0xff]
    %v81 = vld [vmem:[%s2 + $0x18] sm:$0xff]
    %v82 = vld [vmem:[%s2 + $0x20] sm:$0xff]
    %v83 = vld [vmem:[%s2 + $0x28] sm:$0xff]
    %v84 = vld [vmem:[%s2 + $0x30] sm:$0xff]
    %v85 = vld [vmem:[%s2 + $0x38] sm:$0xff]
    %v86 = vld [vmem:[%s2 + $0x40] sm:$0xff]
    %v87 = vld [vmem:[%s2 + $0x48] sm:$0xff]
    %v88 = vld [vmem:[%s2 + $0x50] sm:$0xff]
    %v89 = vld [vmem:[%s2 + $0x58] sm:$0xff]
    %v90 = vld [vmem:[%s2 + $0x60] sm:$0xff]
    %v91 = vld [vmem:[%s2 + $0x68] sm:$0xff]
    %v92 = vld [vmem:[%s2 + $0x70] sm:$0xff]
    %v93 = vld [vmem:[%s2 + $0x78] sm:$0xff]
    %v94 = vld [vmem:[%s2 + $0x80] sm:$0xff]
    %v95 = vld [vmem:[%s2 + $0x88] sm:$0xff]
    %v96 = vld [vmem:[%s2 + $0x90] sm:$0xff]
    %v97 = vld [vmem:[%s2 + $0x98] sm:$0xff]
    %v98 = vld [vmem:[%s2 + $0xa0] sm:$0xff]
    %v99 = vld [vmem:[%s2 + $0xa8] sm:$0xff]
    %v100 = vld [vmem:[%s2 + $0xb0] sm:$0xff]
    %v101 = vld [vmem:[%s2 + $0xb8] sm:$0xff]
    %v102 = vld [vmem:[%s2 + $0xc0] sm:$0xff]
    %v103 = vld [vmem:[%s2 + $0xc8] sm:$0xff]
    %v104 = vld [vmem:[%s2 + $0xd0] sm:$0xff]
    %v105 = vld [vmem:[%s2 + $0xd8] sm:$0xff]
    %v106 = vld [vmem:[%s2 + $0xe0] sm:$0xff]
    %v107 = vld [vmem:[%s2 + $0xe8] sm:$0xff]
    %v108 = vld [vmem:[%s2 + $0xf0] sm:$0xff]
    %v109 = vld [vmem:[%s2 + $0xf8] sm:$0xff]
    %111 = vset.pattern.permute.xlu0 0
    %112 = vperm.xlu0 %111, %v78
    %v113 = vpop.permute.xlu0 %112
    %116 = vset.pattern.permute.xlu0 0
    %117 = vperm.xlu0 %116, %v79
    %v118 = vpop.permute.xlu0 %117
    %121 = vset.pattern.permute.xlu0 0
    %122 = vperm.xlu0 %121, %v80
    %v123 = vpop.permute.xlu0 %122
    %126 = vset.pattern.permute.xlu0 0
    %127 = vperm.xlu0 %126, %v81
    %v128 = vpop.permute.xlu0 %127
    %131 = vset.pattern.permute.xlu0 0
    %132 = vperm.xlu0 %131, %v82
    %v133 = vpop.permute.xlu0 %132
    %136 = vset.pattern.permute.xlu0 0
    %137 = vperm.xlu0 %136, %v83
    %v138 = vpop.permute.xlu0 %137
    %141 = vset.pattern.permute.xlu0 0
    %142 = vperm.xlu0 %141, %v84
    %v143 = vpop.permute.xlu0 %142
    %146 = vset.pattern.permute.xlu0 0
    %147 = vperm.xlu0 %146, %v85
    %v148 = vpop.permute.xlu0 %147
    %151 = vset.pattern.permute.xlu0 0
    %152 = vperm.xlu0 %151, %v86
    %v153 = vpop.permute.xlu0 %152
    %156 = vset.pattern.permute.xlu0 0
    %157 = vperm.xlu0 %156, %v87
    %v158 = vpop.permute.xlu0 %157
    %161 = vset.pattern.permute.xlu0 0
    %162 = vperm.xlu0 %161, %v88
    %v163 = vpop.permute.xlu0 %162
    %166 = vset.pattern.permute.xlu0 0
    %167 = vperm.xlu0 %166, %v89
    %v168 = vpop.permute.xlu0 %167
    %171 = vset.pattern.permute.xlu0 0
    %172 = vperm.xlu0 %171, %v90
    %v173 = vpop.permute.xlu0 %172
    %176 = vset.pattern.permute.xlu0 0
    %177 = vperm.xlu0 %176, %v91
    %v178 = vpop.permute.xlu0 %177
    %181 = vset.pattern.permute.xlu0 0
    %182 = vperm.xlu0 %181, %v92
    %v183 = vpop.permute.xlu0 %182
    %186 = vset.pattern.permute.xlu0 0
    %187 = vperm.xlu0 %186, %v93
    %v188 = vpop.permute.xlu0 %187
    %191 = vset.pattern.permute.xlu0 0
    %192 = vperm.xlu0 %191, %v94
    %v193 = vpop.permute.xlu0 %192
    %196 = vset.pattern.permute.xlu0 0
    %197 = vperm.xlu0 %196, %v95
    %v198 = vpop.permute.xlu0 %197
    %201 = vset.pattern.permute.xlu0 0
    %202 = vperm.xlu0 %201, %v96
    %v203 = vpop.permute.xlu0 %202
    %206 = vset.pattern.permute.xlu0 0
    %207 = vperm.xlu0 %206, %v97
    %v208 = vpop.permute.xlu0 %207
    %211 = vset.pattern.permute.xlu0 0
    %212 = vperm.xlu0 %211, %v98
    %v213 = vpop.permute.xlu0 %212
    %216 = vset.pattern.permute.xlu0 0
    %217 = vperm.xlu0 %216, %v99
    %v218 = vpop.permute.xlu0 %217
    %221 = vset.pattern.permute.xlu0 0
    %222 = vperm.xlu0 %221, %v100
    %v223 = vpop.permute.xlu0 %222
    %226 = vset.pattern.permute.xlu0 0
    %227 = vperm.xlu0 %226, %v101
    %v228 = vpop.permute.xlu0 %227
    %231 = vset.pattern.permute.xlu0 0
    %232 = vperm.xlu0 %231, %v102
    %v233 = vpop.permute.xlu0 %232
    %236 = vset.pattern.permute.xlu0 0
    %237 = vperm.xlu0 %236, %v103
    %v238 = vpop.permute.xlu0 %237
    %241 = vset.pattern.permute.xlu0 0
    %242 = vperm.xlu0 %241, %v104
    %v243 = vpop.permute.xlu0 %242
    %246 = vset.pattern.permute.xlu0 0
    %247 = vperm.xlu0 %246, %v105
    %v248 = vpop.permute.xlu0 %247
    %251 = vset.pattern.permute.xlu0 0
    %252 = vperm.xlu0 %251, %v106
    %v253 = vpop.permute.xlu0 %252
    %256 = vset.pattern.permute.xlu0 0
    %257 = vperm.xlu0 %256, %v107
    %v258 = vpop.permute.xlu0 %257
    %261 = vset.pattern.permute.xlu0 0
    %262 = vperm.xlu0 %261, %v108
    %v263 = vpop.permute.xlu0 %262
    %266 = vset.pattern.permute.xlu0 0
    %267 = vperm.xlu0 %266, %v109
    %v268 = vpop.permute.xlu0 %267
    %v302 = vunpack.c.l.b16 %v30
    %v303 = vunpack.c.l.b16 %v31
    %v304 = vunpack.c.l.b16 %v32
    %v305 = vunpack.c.l.b16 %v33
    %v306 = vunpack.c.l.b16 %v34
    %v307 = vunpack.c.l.b16 %v35
    %v308 = vunpack.c.l.b16 %v36
    %v309 = vunpack.c.l.b16 %v37
    %v310 = vunpack.c.l.b16 %v38
    %v311 = vunpack.c.l.b16 %v39
    %v312 = vunpack.c.l.b16 %v40
    %v313 = vunpack.c.l.b16 %v41
    %v314 = vunpack.c.l.b16 %v42
    %v315 = vunpack.c.l.b16 %v43
    %v316 = vunpack.c.l.b16 %v44
    %v317 = vunpack.c.l.b16 %v45
    %v318 = vunpack.c.l.b16 %v46
    %v319 = vunpack.c.l.b16 %v47
    %v320 = vunpack.c.l.b16 %v48
    %v321 = vunpack.c.l.b16 %v49
    %v322 = vunpack.c.l.b16 %v50
    %v323 = vunpack.c.l.b16 %v51
    %v324 = vunpack.c.l.b16 %v52
    %v325 = vunpack.c.l.b16 %v53
    %v326 = vunpack.c.l.b16 %v54
    %v327 = vunpack.c.l.b16 %v55
    %v328 = vunpack.c.l.b16 %v56
    %v329 = vunpack.c.l.b16 %v57
    %v330 = vunpack.c.l.b16 %v58
    %v331 = vunpack.c.l.b16 %v59
    %v332 = vunpack.c.l.b16 %v60
    %v333 = vunpack.c.l.b16 %v61
    %v334 = vpack.c.b16 %v303, %v302
    %v335 = vpack.c.b16 %v305, %v304
    %v336 = vpack.c.b16 %v307, %v306
    %v337 = vpack.c.b16 %v309, %v308
    %v338 = vpack.c.b16 %v311, %v310
    %v339 = vpack.c.b16 %v313, %v312
    %v340 = vpack.c.b16 %v315, %v314
    %v341 = vpack.c.b16 %v317, %v316
    %v342 = vpack.c.b16 %v319, %v318
    %v343 = vpack.c.b16 %v321, %v320
    %v344 = vpack.c.b16 %v323, %v322
    %v345 = vpack.c.b16 %v325, %v324
    %v346 = vpack.c.b16 %v327, %v326
    %v347 = vpack.c.b16 %v329, %v328
    %v348 = vpack.c.b16 %v331, %v330
    %v349 = vpack.c.b16 %v333, %v332
    %v382 = vunpack.c.l.b16 %v62
    %v383 = vunpack.c.l.b16 %v63
    %v384 = vunpack.c.l.b16 %v64
    %v385 = vunpack.c.l.b16 %v65
    %v386 = vunpack.c.l.b16 %v66
    %v387 = vunpack.c.l.b16 %v67
    %v388 = vunpack.c.l.b16 %v68
    %v389 = vunpack.c.l.b16 %v69
    %v390 = vunpack.c.l.b16 %v70
    %v391 = vunpack.c.l.b16 %v71
    %v392 = vunpack.c.l.b16 %v72
    %v393 = vunpack.c.l.b16 %v73
    %v394 = vunpack.c.l.b16 %v74
    %v395 = vunpack.c.l.b16 %v75
    %v396 = vunpack.c.l.b16 %v76
    %v397 = vunpack.c.l.b16 %v77
    %v398 = vpack.c.b16 %v383, %v382
    %v399 = vpack.c.b16 %v385, %v384
    %v400 = vpack.c.b16 %v387, %v386
    %v401 = vpack.c.b16 %v389, %v388
    %v402 = vpack.c.b16 %v391, %v390
    %v403 = vpack.c.b16 %v393, %v392
    %v404 = vpack.c.b16 %v395, %v394
    %v405 = vpack.c.b16 %v397, %v396
    %414 = vmatprep.subr.bf16.mxu0 0
    %415 = vmatpush1.bf16.msra.mxu0 %v398
    %416 = vmatprep.subr.bf16.mxu0 0
    %417 = vmatpush1.bf16.msra.mxu0 %v399
    %418 = vmatprep.subr.bf16.mxu0 0
    %419 = vmatpush1.bf16.msra.mxu0 %v400
    %420 = vmatprep.subr.bf16.mxu0 0
    %421 = vmatpush1.bf16.msra.mxu0 %v401
    %422 = vmatprep.subr.bf16.mxu0 0
    %423 = vmatpush1.bf16.msra.mxu0 %v402
    %424 = vmatprep.subr.bf16.mxu0 0
    %425 = vmatpush1.bf16.msra.mxu0 %v403
    %426 = vmatprep.subr.bf16.mxu0 0
    %427 = vmatpush1.bf16.msra.mxu0 %v404
    %428 = vmatprep.subr.bf16.mxu0 0
    %429 = vmatpush1.bf16.msra.mxu0 %v405
    %430 = vmatprep.subr.bf16.mxu0 0
    %431 = vmatpush1.bf16.msra.mxu0 0
    %432 = vmatprep.subr.bf16.mxu0 0
    %433 = vmatpush1.bf16.msra.mxu0 0
    %434 = vmatprep.subr.bf16.mxu0 0
    %435 = vmatpush1.bf16.msra.mxu0 0
    %436 = vmatprep.subr.bf16.mxu0 0
    %437 = vmatpush1.bf16.msra.mxu0 0
    %438 = vmatprep.subr.bf16.mxu0 0
    %439 = vmatpush1.bf16.msra.mxu0 0
    %440 = vmatprep.subr.bf16.mxu0 0
    %441 = vmatpush1.bf16.msra.mxu0 0
    %442 = vmatprep.subr.bf16.mxu0 0
    %443 = vmatpush1.bf16.msra.mxu0 0
    %444 = vmatprep.subr.bf16.mxu0 0
    %445 = vmatpush1.bf16.msra.mxu0 0
    %446 = vmatprep.mubr.bf16.mxu0 0
    %447 = vmatmul.mubr.bf16.gmra.mrb[0].mxu0 %v334
    %v448 = vpop.f32.mrb[0].mxu0
    %v449 = vadd.f32 %v113, %v448
    %v450 = vpop.f32.mrb[0].mxu0
    %v451 = vpop.f32.mrb[0].mxu0
    %v452 = vadd.f32 %v118, %v451
    %v453 = vpop.f32.mrb[0].mxu0
    %454 = vmatprep.mubr.bf16.mxu0 0
    %455 = vmatmul.mubr.bf16.gmra.mrb[0].mxu0 %v335
    %v456 = vpop.f32.mrb[0].mxu0
    %v457 = vadd.f32 %v123, %v456
    %v458 = vpop.f32.mrb[0].mxu0
    %v459 = vpop.f32.mrb[0].mxu0
    %v460 = vadd.f32 %v128, %v459
    %v461 = vpop.f32.mrb[0].mxu0
    %462 = vmatprep.mubr.bf16.mxu0 0
    %463 = vmatmul.mubr.bf16.gmra.mrb[0].mxu0 %v336
    %v464 = vpop.f32.mrb[0].mxu0
    %v465 = vadd.f32 %v133, %v464
    %v466 = vpop.f32.mrb[0].mxu0
    %v467 = vpop.f32.mrb[0].mxu0
    %v468 = vadd.f32 %v138, %v467
    %v469 = vpop.f32.mrb[0].mxu0
    %470 = vmatprep.mubr.bf16.mxu0 0
    %471 = vmatmul.mubr.bf16.gmra.mrb[0].mxu0 %v337
    %v472 = vpop.f32.mrb[0].mxu0
    %v473 = vadd.f32 %v143, %v472
    %v474 = vpop.f32.mrb[0].mxu0
    %v475 = vpop.f32.mrb[0].mxu0
    %v476 = vadd.f32 %v148, %v475
    %v477 = vpop.f32.mrb[0].mxu0
    %478 = vmatprep.mubr.bf16.mxu0 0
    %479 = vmatmul.mubr.bf16.gmra.mrb[0].mxu0 %v338
    %v480 = vpop.f32.mrb[0].mxu0
    %v481 = vadd.f32 %v153, %v480
    %v482 = vpop.f32.mrb[0].mxu0
    %v483 = vpop.f32.mrb[0].mxu0
    %v484 = vadd.f32 %v158, %v483
    %v485 = vpop.f32.mrb[0].mxu0
    %486 = vmatprep.mubr.bf16.mxu0 0
    %487 = vmatmul.mubr.bf16.gmra.mrb[0].mxu0 %v339
    %v488 = vpop.f32.mrb[0].mxu0
    %v489 = vadd.f32 %v163, %v488
    %v490 = vpop.f32.mrb[0].mxu0
    %v491 = vpop.f32.mrb[0].mxu0
    %v492 = vadd.f32 %v168, %v491
    %v493 = vpop.f32.mrb[0].mxu0
    %494 = vmatprep.mubr.bf16.mxu0 0
    %495 = vmatmul.mubr.bf16.gmra.mrb[0].mxu0 %v340
    %v496 = vpop.f32.mrb[0].mxu0
    %v497 = vadd.f32 %v173, %v496
    %v498 = vpop.f32.mrb[0].mxu0
    %v499 = vpop.f32.mrb[0].mxu0
    %v500 = vadd.f32 %v178, %v499
    %v501 = vpop.f32.mrb[0].mxu0
    %502 = vmatprep.mubr.bf16.mxu0 0
    %503 = vmatmul.mubr.bf16.gmra.mrb[0].mxu0 %v341
    %v504 = vpop.f32.mrb[0].mxu0
    %v505 = vadd.f32 %v183, %v504
    %v506 = vpop.f32.mrb[0].mxu0
    %v507 = vpop.f32.mrb[0].mxu0
    %v508 = vadd.f32 %v188, %v507
    %v509 = vpop.f32.mrb[0].mxu0
    %510 = vmatprep.mubr.bf16.mxu0 0
    %511 = vmatmul.mubr.bf16.gmra.mrb[0].mxu0 %v342
    %v512 = vpop.f32.mrb[0].mxu0
    %v513 = vadd.f32 %v193, %v512
    %v514 = vpop.f32.mrb[0].mxu0
    %v515 = vpop.f32.mrb[0].mxu0
    %v516 = vadd.f32 %v198, %v515
    %v517 = vpop.f32.mrb[0].mxu0
    %518 = vmatprep.mubr.bf16.mxu0 0
    %519 = vmatmul.mubr.bf16.gmra.mrb[0].mxu0 %v343
    %v520 = vpop.f32.mrb[0].mxu0
    %v521 = vadd.f32 %v203, %v520
    %v522 = vpop.f32.mrb[0].mxu0
    %v523 = vpop.f32.mrb[0].mxu0
    %v524 = vadd.f32 %v208, %v523
    %v525 = vpop.f32.mrb[0].mxu0
    %526 = vmatprep.mubr.bf16.mxu0 0
    %527 = vmatmul.mubr.bf16.gmra.mrb[0].mxu0 %v344
    %v528 = vpop.f32.mrb[0].mxu0
    %v529 = vadd.f32 %v213, %v528
    %v530 = vpop.f32.mrb[0].mxu0
    %v531 = vpop.f32.mrb[0].mxu0
    %v532 = vadd.f32 %v218, %v531
    %v533 = vpop.f32.mrb[0].mxu0
    %534 = vmatprep.mubr.bf16.mxu0 0
    %535 = vmatmul.mubr.bf16.gmra.mrb[0].mxu0 %v345
    %v536 = vpop.f32.mrb[0].mxu0
    %v537 = vadd.f32 %v223, %v536
    %v538 = vpop.f32.mrb[0].mxu0
    %v539 = vpop.f32.mrb[0].mxu0
    %v540 = vadd.f32 %v228, %v539
    %v541 = vpop.f32.mrb[0].mxu0
    %542 = vmatprep.mubr.bf16.mxu0 0
    %543 = vmatmul.mubr.bf16.gmra.mrb[0].mxu0 %v346
    %v544 = vpop.f32.mrb[0].mxu0
    %v545 = vadd.f32 %v233, %v544
    %v546 = vpop.f32.mrb[0].mxu0
    %v547 = vpop.f32.mrb[0].mxu0
    %v548 = vadd.f32 %v238, %v547
    %v549 = vpop.f32.mrb[0].mxu0
    %550 = vmatprep.mubr.bf16.mxu0 0
    %551 = vmatmul.mubr.bf16.gmra.mrb[0].mxu0 %v347
    %v552 = vpop.f32.mrb[0].mxu0
    %v553 = vadd.f32 %v243, %v552
    %v554 = vpop.f32.mrb[0].mxu0
    %v555 = vpop.f32.mrb[0].mxu0
    %v556 = vadd.f32 %v248, %v555
    %v557 = vpop.f32.mrb[0].mxu0
    %558 = vmatprep.mubr.bf16.mxu0 0
    %559 = vmatmul.mubr.bf16.gmra.mrb[0].mxu0 %v348
    %v560 = vpop.f32.mrb[0].mxu0
    %v561 = vadd.f32 %v253, %v560
    %v562 = vpop.f32.mrb[0].mxu0
    %v563 = vpop.f32.mrb[0].mxu0
    %v564 = vadd.f32 %v258, %v563
    %v565 = vpop.f32.mrb[0].mxu0
    %566 = vmatprep.mubr.bf16.mxu0 0
    %567 = vmatmul.mubr.bf16.gmra.mrb[0].mxu0 %v349
    %v568 = vpop.f32.mrb[0].mxu0
    %v569 = vadd.f32 %v263, %v568
    %v570 = vpop.f32.mrb[0].mxu0
    %v571 = vpop.f32.mrb[0].mxu0
    %v572 = vadd.f32 %v268, %v571
    %v573 = vpop.f32.mrb[0].mxu0
    %574 = vdwg.mxu0
    %v575 = vmax.f32 %v449, 0.0
    %v576 = vmax.f32 %v452, 0.0
    %v577 = vmax.f32 %v457, 0.0
    %v578 = vmax.f32 %v460, 0.0
    %v579 = vmax.f32 %v465, 0.0
    %v580 = vmax.f32 %v468, 0.0
    %v581 = vmax.f32 %v473, 0.0
    %v582 = vmax.f32 %v476, 0.0
    %v583 = vmax.f32 %v481, 0.0
    %v584 = vmax.f32 %v484, 0.0
    %v585 = vmax.f32 %v489, 0.0
    %v586 = vmax.f32 %v492, 0.0
    %v587 = vmax.f32 %v497, 0.0
    %v588 = vmax.f32 %v500, 0.0
    %v589 = vmax.f32 %v505, 0.0
    %v590 = vmax.f32 %v508, 0.0
    %v591 = vmax.f32 %v513, 0.0
    %v592 = vmax.f32 %v516, 0.0
    %v593 = vmax.f32 %v521, 0.0
    %v594 = vmax.f32 %v524, 0.0
    %v595 = vmax.f32 %v529, 0.0
    %v596 = vmax.f32 %v532, 0.0
    %v597 = vmax.f32 %v537, 0.0
    %v598 = vmax.f32 %v540, 0.0
    %v599 = vmax.f32 %v545, 0.0
    %v600 = vmax.f32 %v548, 0.0
    %v601 = vmax.f32 %v553, 0.0
    %v602 = vmax.f32 %v556, 0.0
    %v603 = vmax.f32 %v561, 0.0
    %v604 = vmax.f32 %v564, 0.0
    %v605 = vmax.f32 %v569, 0.0
    %v606 = vmax.f32 %v572, 0.0
    %v607 = vld [vmem:[%s3] sm:$0xff]
    %v608 = vld [vmem:[%s3 + $0x8] sm:$0xff]
    %v609 = vld [vmem:[%s3 + $0x10] sm:$0xff]
    %v610 = vld [vmem:[%s3 + $0x18] sm:$0xff]
    %v611 = vld [vmem:[%s3 + $0x20] sm:$0xff]
    %v612 = vld [vmem:[%s3 + $0x28] sm:$0xff]
    %v613 = vld [vmem:[%s3 + $0x30] sm:$0xff]
    %v614 = vld [vmem:[%s3 + $0x38] sm:$0xff]
    %v615 = vld [vmem:[%s3 + $0x40] sm:$0xff]
    %v616 = vld [vmem:[%s3 + $0x48] sm:$0xff]
    %v617 = vld [vmem:[%s3 + $0x50] sm:$0xff]
    %v618 = vld [vmem:[%s3 + $0x58] sm:$0xff]
    %v619 = vld [vmem:[%s3 + $0x60] sm:$0xff]
    %v620 = vld [vmem:[%s3 + $0x68] sm:$0xff]
    %v621 = vld [vmem:[%s3 + $0x70] sm:$0xff]
    %v622 = vld [vmem:[%s3 + $0x78] sm:$0xff]
    %v623 = vld [vmem:[%s3 + $0x80] sm:$0xff]
    %v624 = vld [vmem:[%s3 + $0x88] sm:$0xff]
    %v625 = vld [vmem:[%s3 + $0x90] sm:$0xff]
    %v626 = vld [vmem:[%s3 + $0x98] sm:$0xff]
    %v627 = vld [vmem:[%s3 + $0xa0] sm:$0xff]
    %v628 = vld [vmem:[%s3 + $0xa8] sm:$0xff]
    %v629 = vld [vmem:[%s3 + $0xb0] sm:$0xff]
    %v630 = vld [vmem:[%s3 + $0xb8] sm:$0xff]
    %v631 = vld [vmem:[%s3 + $0xc0] sm:$0xff]
    %v632 = vld [vmem:[%s3 + $0xc8] sm:$0xff]
    %v633 = vld [vmem:[%s3 + $0xd0] sm:$0xff]
    %v634 = vld [vmem:[%s3 + $0xd8] sm:$0xff]
    %v635 = vld [vmem:[%s3 + $0xe0] sm:$0xff]
    %v636 = vld [vmem:[%s3 + $0xe8] sm:$0xff]
    %v637 = vld [vmem:[%s3 + $0xf0] sm:$0xff]
    %v638 = vld [vmem:[%s3 + $0xf8] sm:$0xff]
    %v639 = vpack.c.bf16 %v576, %v575
    %v640 = vpack.c.bf16 %v578, %v577
    %v641 = vpack.c.bf16 %v580, %v579
    %v642 = vpack.c.bf16 %v582, %v581
    %v643 = vpack.c.bf16 %v584, %v583
    %v644 = vpack.c.bf16 %v586, %v585
    %v645 = vpack.c.bf16 %v588, %v587
    %v646 = vpack.c.bf16 %v590, %v589
    %v647 = vpack.c.bf16 %v592, %v591
    %v648 = vpack.c.bf16 %v594, %v593
    %v649 = vpack.c.bf16 %v596, %v595
    %v650 = vpack.c.bf16 %v598, %v597
    %v651 = vpack.c.bf16 %v600, %v599
    %v652 = vpack.c.bf16 %v602, %v601
    %v653 = vpack.c.bf16 %v604, %v603
    %v654 = vpack.c.bf16 %v606, %v605
    %v655 = vld [vmem:[%s4] sm:$0xff]
    %v656 = vld [vmem:[%s4 + $0x8] sm:$0xff]
    %v657 = vld [vmem:[%s4 + $0x10] sm:$0xff]
    %v658 = vld [vmem:[%s4 + $0x18] sm:$0xff]
    %v659 = vld [vmem:[%s4 + $0x20] sm:$0xff]
    %v660 = vld [vmem:[%s4 + $0x28] sm:$0xff]
    %v661 = vld [vmem:[%s4 + $0x30] sm:$0xff]
    %v662 = vld [vmem:[%s4 + $0x38] sm:$0xff]
    %v663 = vld [vmem:[%s4 + $0x40] sm:$0xff]
    %v664 = vld [vmem:[%s4 + $0x48] sm:$0xff]
    %v665 = vld [vmem:[%s4 + $0x50] sm:$0xff]
    %v666 = vld [vmem:[%s4 + $0x58] sm:$0xff]
    %v667 = vld [vmem:[%s4 + $0x60] sm:$0xff]
    %v668 = vld [vmem:[%s4 + $0x68] sm:$0xff]
    %v669 = vld [vmem:[%s4 + $0x70] sm:$0xff]
    %v670 = vld [vmem:[%s4 + $0x78] sm:$0xff]
    %v671 = vld [vmem:[%s4 + $0x80] sm:$0xff]
    %v672 = vld [vmem:[%s4 + $0x88] sm:$0xff]
    %v673 = vld [vmem:[%s4 + $0x90] sm:$0xff]
    %v674 = vld [vmem:[%s4 + $0x98] sm:$0xff]
    %v675 = vld [vmem:[%s4 + $0xa0] sm:$0xff]
    %v676 = vld [vmem:[%s4 + $0xa8] sm:$0xff]
    %v677 = vld [vmem:[%s4 + $0xb0] sm:$0xff]
    %v678 = vld [vmem:[%s4 + $0xb8] sm:$0xff]
    %v679 = vld [vmem:[%s4 + $0xc0] sm:$0xff]
    %v680 = vld [vmem:[%s4 + $0xc8] sm:$0xff]
    %v681 = vld [vmem:[%s4 + $0xd0] sm:$0xff]
    %v682 = vld [vmem:[%s4 + $0xd8] sm:$0xff]
    %v683 = vld [vmem:[%s4 + $0xe0] sm:$0xff]
    %v684 = vld [vmem:[%s4 + $0xe8] sm:$0xff]
    %v685 = vld [vmem:[%s4 + $0xf0] sm:$0xff]
    %v686 = vld [vmem:[%s4 + $0xf8] sm:$0xff]
    %688 = vset.pattern.permute.xlu0 0
    %689 = vperm.xlu0 %688, %v655
    %v690 = vpop.permute.xlu0 %689
    %693 = vset.pattern.permute.xlu0 0
    %694 = vperm.xlu0 %693, %v656
    %v695 = vpop.permute.xlu0 %694
    %698 = vset.pattern.permute.xlu0 0
    %699 = vperm.xlu0 %698, %v657
    %v700 = vpop.permute.xlu0 %699
    %703 = vset.pattern.permute.xlu0 0
    %704 = vperm.xlu0 %703, %v658
    %v705 = vpop.permute.xlu0 %704
    %708 = vset.pattern.permute.xlu0 0
    %709 = vperm.xlu0 %708, %v659
    %v710 = vpop.permute.xlu0 %709
    %713 = vset.pattern.permute.xlu0 0
    %714 = vperm.xlu0 %713, %v660
    %v715 = vpop.permute.xlu0 %714
    %718 = vset.pattern.permute.xlu0 0
    %719 = vperm.xlu0 %718, %v661
    %v720 = vpop.permute.xlu0 %719
    %723 = vset.pattern.permute.xlu0 0
    %724 = vperm.xlu0 %723, %v662
    %v725 = vpop.permute.xlu0 %724
    %728 = vset.pattern.permute.xlu0 0
    %729 = vperm.xlu0 %728, %v663
    %v730 = vpop.permute.xlu0 %729
    %733 = vset.pattern.permute.xlu0 0
    %734 = vperm.xlu0 %733, %v664
    %v735 = vpop.permute.xlu0 %734
    %738 = vset.pattern.permute.xlu0 0
    %739 = vperm.xlu0 %738, %v665
    %v740 = vpop.permute.xlu0 %739
    %743 = vset.pattern.permute.xlu0 0
    %744 = vperm.xlu0 %743, %v666
    %v745 = vpop.permute.xlu0 %744
    %748 = vset.pattern.permute.xlu0 0
    %749 = vperm.xlu0 %748, %v667
    %v750 = vpop.permute.xlu0 %749
    %753 = vset.pattern.permute.xlu0 0
    %754 = vperm.xlu0 %753, %v668
    %v755 = vpop.permute.xlu0 %754
    %758 = vset.pattern.permute.xlu0 0
    %759 = vperm.xlu0 %758, %v669
    %v760 = vpop.permute.xlu0 %759
    %763 = vset.pattern.permute.xlu0 0
    %764 = vperm.xlu0 %763, %v670
    %v765 = vpop.permute.xlu0 %764
    %768 = vset.pattern.permute.xlu0 0
    %769 = vperm.xlu0 %768, %v671
    %v770 = vpop.permute.xlu0 %769
    %773 = vset.pattern.permute.xlu0 0
    %774 = vperm.xlu0 %773, %v672
    %v775 = vpop.permute.xlu0 %774
    %778 = vset.pattern.permute.xlu0 0
    %779 = vperm.xlu0 %778, %v673
    %v780 = vpop.permute.xlu0 %779
    %783 = vset.pattern.permute.xlu0 0
    %784 = vperm.xlu0 %783, %v674
    %v785 = vpop.permute.xlu0 %784
    %788 = vset.pattern.permute.xlu0 0
    %789 = vperm.xlu0 %788, %v675
    %v790 = vpop.permute.xlu0 %789
    %793 = vset.pattern.permute.xlu0 0
    %794 = vperm.xlu0 %793, %v676
    %v795 = vpop.permute.xlu0 %794
    %798 = vset.pattern.permute.xlu0 0
    %799 = vperm.xlu0 %798, %v677
    %v800 = vpop.permute.xlu0 %799
    %803 = vset.pattern.permute.xlu0 0
    %804 = vperm.xlu0 %803, %v678
    %v805 = vpop.permute.xlu0 %804
    %808 = vset.pattern.permute.xlu0 0
    %809 = vperm.xlu0 %808, %v679
    %v810 = vpop.permute.xlu0 %809
    %813 = vset.pattern.permute.xlu0 0
    %814 = vperm.xlu0 %813, %v680
    %v815 = vpop.permute.xlu0 %814
    %818 = vset.pattern.permute.xlu0 0
    %819 = vperm.xlu0 %818, %v681
    %v820 = vpop.permute.xlu0 %819
    %823 = vset.pattern.permute.xlu0 0
    %824 = vperm.xlu0 %823, %v682
    %v825 = vpop.permute.xlu0 %824
    %828 = vset.pattern.permute.xlu0 0
    %829 = vperm.xlu0 %828, %v683
    %v830 = vpop.permute.xlu0 %829
    %833 = vset.pattern.permute.xlu0 0
    %834 = vperm.xlu0 %833, %v684
    %v835 = vpop.permute.xlu0 %834
    %838 = vset.pattern.permute.xlu0 0
    %839 = vperm.xlu0 %838, %v685
    %v840 = vpop.permute.xlu0 %839
    %843 = vset.pattern.permute.xlu0 0
    %844 = vperm.xlu0 %843, %v686
    %v845 = vpop.permute.xlu0 %844
    %v879 = vunpack.c.l.b16 %v607
    %v880 = vunpack.c.h.b16 %v607
    %v881 = vunpack.c.l.b16 %v608
    %v882 = vunpack.c.h.b16 %v608
    %v883 = vunpack.c.l.b16 %v609
    %v884 = vunpack.c.h.b16 %v609
    %v885 = vunpack.c.l.b16 %v610
    %v886 = vunpack.c.h.b16 %v610
    %v887 = vunpack.c.l.b16 %v611
    %v888 = vunpack.c.h.b16 %v611
    %v889 = vunpack.c.l.b16 %v612
    %v890 = vunpack.c.h.b16 %v612
    %v891 = vunpack.c.l.b16 %v613
    %v892 = vunpack.c.h.b16 %v613
    %v893 = vunpack.c.l.b16 %v614
    %v894 = vunpack.c.h.b16 %v614
    %v895 = vunpack.c.l.b16 %v615
    %v896 = vunpack.c.h.b16 %v615
    %v897 = vunpack.c.l.b16 %v616
    %v898 = vunpack.c.h.b16 %v616
    %v899 = vunpack.c.l.b16 %v617
    %v900 = vunpack.c.h.b16 %v617
    %v901 = vunpack.c.l.b16 %v618
    %v902 = vunpack.c.h.b16 %v618
    %v903 = vunpack.c.l.b16 %v619
    %v904 = vunpack.c.h.b16 %v619
    %v905 = vunpack.c.l.b16 %v620
    %v906 = vunpack.c.h.b16 %v620
    %v907 = vunpack.c.l.b16 %v621
    %v908 = vunpack.c.h.b16 %v621
    %v909 = vunpack.c.l.b16 %v622
    %v910 = vunpack.c.h.b16 %v622
    %v911 = vunpack.c.l.b16 %v623
    %v912 = vunpack.c.h.b16 %v623
    %v913 = vunpack.c.l.b16 %v624
    %v914 = vunpack.c.h.b16 %v624
    %v915 = vunpack.c.l.b16 %v625
    %v916 = vunpack.c.h.b16 %v625
    %v917 = vunpack.c.l.b16 %v626
    %v918 = vunpack.c.h.b16 %v626
    %v919 = vunpack.c.l.b16 %v627
    %v920 = vunpack.c.h.b16 %v627
    %v921 = vunpack.c.l.b16 %v628
    %v922 = vunpack.c.h.b16 %v628
    %v923 = vunpack.c.l.b16 %v629
    %v924 = vunpack.c.h.b16 %v629
    %v925 = vunpack.c.l.b16 %v630
    %v926 = vunpack.c.h.b16 %v630
    %v927 = vunpack.c.l.b16 %v631
    %v928 = vunpack.c.h.b16 %v631
    %v929 = vunpack.c.l.b16 %v632
    %v930 = vunpack.c.h.b16 %v632
    %v931 = vunpack.c.l.b16 %v633
    %v932 = vunpack.c.h.b16 %v633
    %v933 = vunpack.c.l.b16 %v634
    %v934 = vunpack.c.h.b16 %v634
    %v935 = vunpack.c.l.b16 %v635
    %v936 = vunpack.c.h.b16 %v635
    %v937 = vunpack.c.l.b16 %v636
    %v938 = vunpack.c.h.b16 %v636
    %v939 = vunpack.c.l.b16 %v637
    %v940 = vunpack.c.h.b16 %v637
    %v941 = vunpack.c.l.b16 %v638
    %v942 = vunpack.c.h.b16 %v638
    %v943 = vpack.c.b16 %v881, %v879
    %v944 = vpack.c.b16 %v882, %v880
    %v945 = vpack.c.b16 %v885, %v883
    %v946 = vpack.c.b16 %v886, %v884
    %v947 = vpack.c.b16 %v889, %v887
    %v948 = vpack.c.b16 %v890, %v888
    %v949 = vpack.c.b16 %v893, %v891
    %v950 = vpack.c.b16 %v894, %v892
    %v951 = vpack.c.b16 %v897, %v895
    %v952 = vpack.c.b16 %v898, %v896
    %v953 = vpack.c.b16 %v901, %v899
    %v954 = vpack.c.b16 %v902, %v900
    %v955 = vpack.c.b16 %v905, %v903
    %v956 = vpack.c.b16 %v906, %v904
    %v957 = vpack.c.b16 %v909, %v907
    %v958 = vpack.c.b16 %v910, %v908
    %v959 = vpack.c.b16 %v913, %v911
    %v960 = vpack.c.b16 %v914, %v912
    %v961 = vpack.c.b16 %v917, %v915
    %v962 = vpack.c.b16 %v918, %v916
    %v963 = vpack.c.b16 %v921, %v919
    %v964 = vpack.c.b16 %v922, %v920
    %v965 = vpack.c.b16 %v925, %v923
    %v966 = vpack.c.b16 %v926, %v924
    %v967 = vpack.c.b16 %v929, %v927
    %v968 = vpack.c.b16 %v930, %v928
    %v969 = vpack.c.b16 %v933, %v931
    %v970 = vpack.c.b16 %v934, %v932
    %v971 = vpack.c.b16 %v937, %v935
    %v972 = vpack.c.b16 %v938, %v936
    %v973 = vpack.c.b16 %v941, %v939
    %v974 = vpack.c.b16 %v942, %v940
    %1007 = vmatprep.subr.bf16.mxu0 0
    %1008 = vmatpush1.bf16.msra.mxu0 %v639
    %1009 = vmatprep.subr.bf16.mxu0 0
    %1010 = vmatpush1.bf16.msra.mxu0 %v640
    %1011 = vmatprep.subr.bf16.mxu0 0
    %1012 = vmatpush1.bf16.msra.mxu0 %v641
    %1013 = vmatprep.subr.bf16.mxu0 0
    %1014 = vmatpush1.bf16.msra.mxu0 %v642
    %1015 = vmatprep.subr.bf16.mxu0 0
    %1016 = vmatpush1.bf16.msra.mxu0 %v643
    %1017 = vmatprep.subr.bf16.mxu0 0
    %1018 = vmatpush1.bf16.msra.mxu0 %v644
    %1019 = vmatprep.subr.bf16.mxu0 0
    %1020 = vmatpush1.bf16.msra.mxu0 %v645
    %1021 = vmatprep.subr.bf16.mxu0 0
    %1022 = vmatpush1.bf16.msra.mxu0 %v646
    %1023 = vmatprep.subr.bf16.mxu0 0
    %1024 = vmatpush1.bf16.msra.mxu0 %v647
    %1025 = vmatprep.subr.bf16.mxu0 0
    %1026 = vmatpush1.bf16.msra.mxu0 %v648
    %1027 = vmatprep.subr.bf16.mxu0 0
    %1028 = vmatpush1.bf16.msra.mxu0 %v649
    %1029 = vmatprep.subr.bf16.mxu0 0
    %1030 = vmatpush1.bf16.msra.mxu0 %v650
    %1031 = vmatprep.subr.bf16.mxu0 0
    %1032 = vmatpush1.bf16.msra.mxu0 %v651
    %1033 = vmatprep.subr.bf16.mxu0 0
    %1034 = vmatpush1.bf16.msra.mxu0 %v652
    %1035 = vmatprep.subr.bf16.mxu0 0
    %1036 = vmatpush1.bf16.msra.mxu0 %v653
    %1037 = vmatprep.subr.bf16.mxu0 0
    %1038 = vmatpush1.bf16.msra.mxu0 %v654
    %1039 = vmatprep.mubr.bf16.mxu0 %v944
    %1040 = vmatmul.mubr.bf16.gmra.mrb[0].mxu0 %v943
    %v1041 = vpop.f32.mrb[0].mxu0
    %v1042 = vadd.f32 %v690, %v1041
    %v1043 = vpop.f32.mrb[0].mxu0
    %v1044 = vpop.f32.mrb[0].mxu0
    %v1045 = vadd.f32 %v695, %v1044
    %v1046 = vpop.f32.mrb[0].mxu0
    %1047 = vmatprep.mubr.bf16.mxu0 %v946
    %1048 = vmatmul.mubr.bf16.gmra.mrb[0].mxu0 %v945
    %v1049 = vpop.f32.mrb[0].mxu0
    %v1050 = vadd.f32 %v700, %v1049
    %v1051 = vpop.f32.mrb[0].mxu0
    %v1052 = vpop.f32.mrb[0].mxu0
    %v1053 = vadd.f32 %v705, %v1052
    %v1054 = vpop.f32.mrb[0].mxu0
    %1055 = vmatprep.mubr.bf16.mxu0 %v948
    %1056 = vmatmul.mubr.bf16.gmra.mrb[0].mxu0 %v947
    %v1057 = vpop.f32.mrb[0].mxu0
    %v1058 = vadd.f32 %v710, %v1057
    %v1059 = vpop.f32.mrb[0].mxu0
    %v1060 = vpop.f32.mrb[0].mxu0
    %v1061 = vadd.f32 %v715, %v1060
    %v1062 = vpop.f32.mrb[0].mxu0
    %1063 = vmatprep.mubr.bf16.mxu0 %v950
    %1064 = vmatmul.mubr.bf16.gmra.mrb[0].mxu0 %v949
    %v1065 = vpop.f32.mrb[0].mxu0
    %v1066 = vadd.f32 %v720, %v1065
    %v1067 = vpop.f32.mrb[0].mxu0
    %v1068 = vpop.f32.mrb[0].mxu0
    %v1069 = vadd.f32 %v725, %v1068
    %v1070 = vpop.f32.mrb[0].mxu0
    %1071 = vmatprep.mubr.bf16.mxu0 %v952
    %1072 = vmatmul.mubr.bf16.gmra.mrb[0].mxu0 %v951
    %v1073 = vpop.f32.mrb[0].mxu0
    %v1074 = vadd.f32 %v730, %v1073
    %v1075 = vpop.f32.mrb[0].mxu0
    %v1076 = vpop.f32.mrb[0].mxu0
    %v1077 = vadd.f32 %v735, %v1076
    %v1078 = vpop.f32.mrb[0].mxu0
    %1079 = vmatprep.mubr.bf16.mxu0 %v954
    %1080 = vmatmul.mubr.bf16.gmra.mrb[0].mxu0 %v953
    %v1081 = vpop.f32.mrb[0].mxu0
    %v1082 = vadd.f32 %v740, %v1081
    %v1083 = vpop.f32.mrb[0].mxu0
    %v1084 = vpop.f32.mrb[0].mxu0
    %v1085 = vadd.f32 %v745, %v1084
    %v1086 = vpop.f32.mrb[0].mxu0
    %1087 = vmatprep.mubr.bf16.mxu0 %v956
    %1088 = vmatmul.mubr.bf16.gmra.mrb[0].mxu0 %v955
    %v1089 = vpop.f32.mrb[0].mxu0
    %v1090 = vadd.f32 %v750, %v1089
    %v1091 = vpop.f32.mrb[0].mxu0
    %v1092 = vpop.f32.mrb[0].mxu0
    %v1093 = vadd.f32 %v755, %v1092
    %v1094 = vpop.f32.mrb[0].mxu0
    %1095 = vmatprep.mubr.bf16.mxu0 %v958
    %1096 = vmatmul.mubr.bf16.gmra.mrb[0].mxu0 %v957
    %v1097 = vpop.f32.mrb[0].mxu0
    %v1098 = vadd.f32 %v760, %v1097
    %v1099 = vpop.f32.mrb[0].mxu0
    %v1100 = vpop.f32.mrb[0].mxu0
    %v1101 = vadd.f32 %v765, %v1100
    %v1102 = vpop.f32.mrb[0].mxu0
    %1103 = vmatprep.mubr.bf16.mxu0 %v960
    %1104 = vmatmul.mubr.bf16.gmra.mrb[0].mxu0 %v959
    %v1105 = vpop.f32.mrb[0].mxu0
    %v1106 = vadd.f32 %v770, %v1105
    %v1107 = vpop.f32.mrb[0].mxu0
    %v1108 = vpop.f32.mrb[0].mxu0
    %v1109 = vadd.f32 %v775, %v1108
    %v1110 = vpop.f32.mrb[0].mxu0
    %1111 = vmatprep.mubr.bf16.mxu0 %v962
    %1112 = vmatmul.mubr.bf16.gmra.mrb[0].mxu0 %v961
    %v1113 = vpop.f32.mrb[0].mxu0
    %v1114 = vadd.f32 %v780, %v1113
    %v1115 = vpop.f32.mrb[0].mxu0
    %v1116 = vpop.f32.mrb[0].mxu0
    %v1117 = vadd.f32 %v785, %v1116
    %v1118 = vpop.f32.mrb[0].mxu0
    %1119 = vmatprep.mubr.bf16.mxu0 %v964
    %1120 = vmatmul.mubr.bf16.gmra.mrb[0].mxu0 %v963
    %v1121 = vpop.f32.mrb[0].mxu0
    %v1122 = vadd.f32 %v790, %v1121
    %v1123 = vpop.f32.mrb[0].mxu0
    %v1124 = vpop.f32.mrb[0].mxu0
    %v1125 = vadd.f32 %v795, %v1124
    %v1126 = vpop.f32.mrb[0].mxu0
    %1127 = vmatprep.mubr.bf16.mxu0 %v966
    %1128 = vmatmul.mubr.bf16.gmra.mrb[0].mxu0 %v965
    %v1129 = vpop.f32.mrb[0].mxu0
    %v1130 = vadd.f32 %v800, %v1129
    %v1131 = vpop.f32.mrb[0].mxu0
    %v1132 = vpop.f32.mrb[0].mxu0
    %v1133 = vadd.f32 %v805, %v1132
    %v1134 = vpop.f32.mrb[0].mxu0
    %1135 = vmatprep.mubr.bf16.mxu0 %v968
    %1136 = vmatmul.mubr.bf16.gmra.mrb[0].mxu0 %v967
    %v1137 = vpop.f32.mrb[0].mxu0
    %v1138 = vadd.f32 %v810, %v1137
    %v1139 = vpop.f32.mrb[0].mxu0
    %v1140 = vpop.f32.mrb[0].mxu0
    %v1141 = vadd.f32 %v815, %v1140
    %v1142 = vpop.f32.mrb[0].mxu0
    %1143 = vmatprep.mubr.bf16.mxu0 %v970
    %1144 = vmatmul.mubr.bf16.gmra.mrb[0].mxu0 %v969
    %v1145 = vpop.f32.mrb[0].mxu0
    %v1146 = vadd.f32 %v820, %v1145
    %v1147 = vpop.f32.mrb[0].mxu0
    %v1148 = vpop.f32.mrb[0].mxu0
    %v1149 = vadd.f32 %v825, %v1148
    %v1150 = vpop.f32.mrb[0].mxu0
    %1151 = vmatprep.mubr.bf16.mxu0 %v972
    %1152 = vmatmul.mubr.bf16.gmra.mrb[0].mxu0 %v971
    %v1153 = vpop.f32.mrb[0].mxu0
    %v1154 = vadd.f32 %v830, %v1153
    %v1155 = vpop.f32.mrb[0].mxu0
    %v1156 = vpop.f32.mrb[0].mxu0
    %v1157 = vadd.f32 %v835, %v1156
    %v1158 = vpop.f32.mrb[0].mxu0
    %1159 = vmatprep.mubr.bf16.mxu0 %v974
    %1160 = vmatmul.mubr.bf16.gmra.mrb[0].mxu0 %v973
    %v1161 = vpop.f32.mrb[0].mxu0
    %v1162 = vadd.f32 %v840, %v1161
    %v1163 = vpop.f32.mrb[0].mxu0
    %v1164 = vpop.f32.mrb[0].mxu0
    %v1165 = vadd.f32 %v845, %v1164
    %v1166 = vpop.f32.mrb[0].mxu0
    %1167 = vdwg.mxu0
    %v1168 = vmax.f32 %v1042, 0.0
    %v1169 = vmax.f32 %v1045, 0.0
    %v1170 = vmax.f32 %v1050, 0.0
    %v1171 = vmax.f32 %v1053, 0.0
    %v1172 = vmax.f32 %v1058, 0.0
    %v1173 = vmax.f32 %v1061, 0.0
    %v1174 = vmax.f32 %v1066, 0.0
    %v1175 = vmax.f32 %v1069, 0.0
    %v1176 = vmax.f32 %v1074, 0.0
    %v1177 = vmax.f32 %v1077, 0.0
    %v1178 = vmax.f32 %v1082, 0.0
    %v1179 = vmax.f32 %v1085, 0.0
    %v1180 = vmax.f32 %v1090, 0.0
    %v1181 = vmax.f32 %v1093, 0.0
    %v1182 = vmax.f32 %v1098, 0.0
    %v1183 = vmax.f32 %v1101, 0.0
    %v1184 = vmax.f32 %v1106, 0.0
    %v1185 = vmax.f32 %v1109, 0.0
    %v1186 = vmax.f32 %v1114, 0.0
    %v1187 = vmax.f32 %v1117, 0.0
    %v1188 = vmax.f32 %v1122, 0.0
    %v1189 = vmax.f32 %v1125, 0.0
    %v1190 = vmax.f32 %v1130, 0.0
    %v1191 = vmax.f32 %v1133, 0.0
    %v1192 = vmax.f32 %v1138, 0.0
    %v1193 = vmax.f32 %v1141, 0.0
    %v1194 = vmax.f32 %v1146, 0.0
    %v1195 = vmax.f32 %v1149, 0.0
    %v1196 = vmax.f32 %v1154, 0.0
    %v1197 = vmax.f32 %v1157, 0.0
    %v1198 = vmax.f32 %v1162, 0.0
    %v1199 = vmax.f32 %v1165, 0.0
    %v1200 = vld [vmem:[%s5] sm:$0xff]
    %v1201 = vld [vmem:[%s5 + $0x8] sm:$0xff]
    %v1202 = vld [vmem:[%s5 + $0x10] sm:$0xff]
    %v1203 = vld [vmem:[%s5 + $0x18] sm:$0xff]
    %v1204 = vld [vmem:[%s5 + $0x20] sm:$0xff]
    %v1205 = vld [vmem:[%s5 + $0x28] sm:$0xff]
    %v1206 = vld [vmem:[%s5 + $0x30] sm:$0xff]
    %v1207 = vld [vmem:[%s5 + $0x38] sm:$0xff]
    %v1208 = vld [vmem:[%s5 + $0x40] sm:$0xff]
    %v1209 = vld [vmem:[%s5 + $0x48] sm:$0xff]
    %v1210 = vld [vmem:[%s5 + $0x50] sm:$0xff]
    %v1211 = vld [vmem:[%s5 + $0x58] sm:$0xff]
    %v1212 = vld [vmem:[%s5 + $0x60] sm:$0xff]
    %v1213 = vld [vmem:[%s5 + $0x68] sm:$0xff]
    %v1214 = vld [vmem:[%s5 + $0x70] sm:$0xff]
    %v1215 = vld [vmem:[%s5 + $0x78] sm:$0xff]
    %v1216 = vld [vmem:[%s5 + $0x80] sm:$0xff]
    %v1217 = vld [vmem:[%s5 + $0x88] sm:$0xff]
    %v1218 = vld [vmem:[%s5 + $0x90] sm:$0xff]
    %v1219 = vld [vmem:[%s5 + $0x98] sm:$0xff]
    %v1220 = vld [vmem:[%s5 + $0xa0] sm:$0xff]
    %v1221 = vld [vmem:[%s5 + $0xa8] sm:$0xff]
    %v1222 = vld [vmem:[%s5 + $0xb0] sm:$0xff]
    %v1223 = vld [vmem:[%s5 + $0xb8] sm:$0xff]
    %v1224 = vld [vmem:[%s5 + $0xc0] sm:$0xff]
    %v1225 = vld [vmem:[%s5 + $0xc8] sm:$0xff]
    %v1226 = vld [vmem:[%s5 + $0xd0] sm:$0xff]
    %v1227 = vld [vmem:[%s5 + $0xd8] sm:$0xff]
    %v1228 = vld [vmem:[%s5 + $0xe0] sm:$0xff]
    %v1229 = vld [vmem:[%s5 + $0xe8] sm:$0xff]
    %v1230 = vld [vmem:[%s5 + $0xf0] sm:$0xff]
    %v1231 = vld [vmem:[%s5 + $0xf8] sm:$0xff]
    %1233 = vset.pattern.permute.xlu0 0
    %1234 = vperm.xlu0 %1233, %v1200
    %v1235 = vpop.permute.xlu0 %1234
    %1238 = vset.pattern.permute.xlu0 0
    %1239 = vperm.xlu0 %1238, %v1201
    %v1240 = vpop.permute.xlu0 %1239
    %1243 = vset.pattern.permute.xlu0 0
    %1244 = vperm.xlu0 %1243, %v1202
    %v1245 = vpop.permute.xlu0 %1244
    %1248 = vset.pattern.permute.xlu0 0
    %1249 = vperm.xlu0 %1248, %v1203
    %v1250 = vpop.permute.xlu0 %1249
    %1253 = vset.pattern.permute.xlu0 0
    %1254 = vperm.xlu0 %1253, %v1204
    %v1255 = vpop.permute.xlu0 %1254
    %1258 = vset.pattern.permute.xlu0 0
    %1259 = vperm.xlu0 %1258, %v1205
    %v1260 = vpop.permute.xlu0 %1259
    %1263 = vset.pattern.permute.xlu0 0
    %1264 = vperm.xlu0 %1263, %v1206
    %v1265 = vpop.permute.xlu0 %1264
    %1268 = vset.pattern.permute.xlu0 0
    %1269 = vperm.xlu0 %1268, %v1207
    %v1270 = vpop.permute.xlu0 %1269
    %1273 = vset.pattern.permute.xlu0 0
    %1274 = vperm.xlu0 %1273, %v1208
    %v1275 = vpop.permute.xlu0 %1274
    %1278 = vset.pattern.permute.xlu0 0
    %1279 = vperm.xlu0 %1278, %v1209
    %v1280 = vpop.permute.xlu0 %1279
    %1283 = vset.pattern.permute.xlu0 0
    %1284 = vperm.xlu0 %1283, %v1210
    %v1285 = vpop.permute.xlu0 %1284
    %1288 = vset.pattern.permute.xlu0 0
    %1289 = vperm.xlu0 %1288, %v1211
    %v1290 = vpop.permute.xlu0 %1289
    %1293 = vset.pattern.permute.xlu0 0
    %1294 = vperm.xlu0 %1293, %v1212
    %v1295 = vpop.permute.xlu0 %1294
    %1298 = vset.pattern.permute.xlu0 0
    %1299 = vperm.xlu0 %1298, %v1213
    %v1300 = vpop.permute.xlu0 %1299
    %1303 = vset.pattern.permute.xlu0 0
    %1304 = vperm.xlu0 %1303, %v1214
    %v1305 = vpop.permute.xlu0 %1304
    %1308 = vset.pattern.permute.xlu0 0
    %1309 = vperm.xlu0 %1308, %v1215
    %v1310 = vpop.permute.xlu0 %1309
    %1313 = vset.pattern.permute.xlu0 0
    %1314 = vperm.xlu0 %1313, %v1216
    %v1315 = vpop.permute.xlu0 %1314
    %1318 = vset.pattern.permute.xlu0 0
    %1319 = vperm.xlu0 %1318, %v1217
    %v1320 = vpop.permute.xlu0 %1319
    %1323 = vset.pattern.permute.xlu0 0
    %1324 = vperm.xlu0 %1323, %v1218
    %v1325 = vpop.permute.xlu0 %1324
    %1328 = vset.pattern.permute.xlu0 0
    %1329 = vperm.xlu0 %1328, %v1219
    %v1330 = vpop.permute.xlu0 %1329
    %1333 = vset.pattern.permute.xlu0 0
    %1334 = vperm.xlu0 %1333, %v1220
    %v1335 = vpop.permute.xlu0 %1334
    %1338 = vset.pattern.permute.xlu0 0
    %1339 = vperm.xlu0 %1338, %v1221
    %v1340 = vpop.permute.xlu0 %1339
    %1343 = vset.pattern.permute.xlu0 0
    %1344 = vperm.xlu0 %1343, %v1222
    %v1345 = vpop.permute.xlu0 %1344
    %1348 = vset.pattern.permute.xlu0 0
    %1349 = vperm.xlu0 %1348, %v1223
    %v1350 = vpop.permute.xlu0 %1349
    %1353 = vset.pattern.permute.xlu0 0
    %1354 = vperm.xlu0 %1353, %v1224
    %v1355 = vpop.permute.xlu0 %1354
    %1358 = vset.pattern.permute.xlu0 0
    %1359 = vperm.xlu0 %1358, %v1225
    %v1360 = vpop.permute.xlu0 %1359
    %1363 = vset.pattern.permute.xlu0 0
    %1364 = vperm.xlu0 %1363, %v1226
    %v1365 = vpop.permute.xlu0 %1364
    %1368 = vset.pattern.permute.xlu0 0
    %1369 = vperm.xlu0 %1368, %v1227
    %v1370 = vpop.permute.xlu0 %1369
    %1373 = vset.pattern.permute.xlu0 0
    %1374 = vperm.xlu0 %1373, %v1228
    %v1375 = vpop.permute.xlu0 %1374
    %1378 = vset.pattern.permute.xlu0 0
    %1379 = vperm.xlu0 %1378, %v1229
    %v1380 = vpop.permute.xlu0 %1379
    %1383 = vset.pattern.permute.xlu0 0
    %1384 = vperm.xlu0 %1383, %v1230
    %v1385 = vpop.permute.xlu0 %1384
    %1388 = vset.pattern.permute.xlu0 0
    %1389 = vperm.xlu0 %1388, %v1231
    %v1390 = vpop.permute.xlu0 %1389
    %v1392 = vmul.f32 %v1168, %v1235
    %v1393 = vmul.f32 %v1169, %v1240
    %v1394 = vmul.f32 %v1170, %v1245
    %v1395 = vmul.f32 %v1171, %v1250
    %v1396 = vmul.f32 %v1172, %v1255
    %v1397 = vmul.f32 %v1173, %v1260
    %v1398 = vmul.f32 %v1174, %v1265
    %v1399 = vmul.f32 %v1175, %v1270
    %v1400 = vmul.f32 %v1176, %v1275
    %v1401 = vmul.f32 %v1177, %v1280
    %v1402 = vmul.f32 %v1178, %v1285
    %v1403 = vmul.f32 %v1179, %v1290
    %v1404 = vmul.f32 %v1180, %v1295
    %v1405 = vmul.f32 %v1181, %v1300
    %v1406 = vmul.f32 %v1182, %v1305
    %v1407 = vmul.f32 %v1183, %v1310
    %v1408 = vmul.f32 %v1184, %v1315
    %v1409 = vmul.f32 %v1185, %v1320
    %v1410 = vmul.f32 %v1186, %v1325
    %v1411 = vmul.f32 %v1187, %v1330
    %v1412 = vmul.f32 %v1188, %v1335
    %v1413 = vmul.f32 %v1189, %v1340
    %v1414 = vmul.f32 %v1190, %v1345
    %v1415 = vmul.f32 %v1191, %v1350
    %v1416 = vmul.f32 %v1192, %v1355
    %v1417 = vmul.f32 %v1193, %v1360
    %v1418 = vmul.f32 %v1194, %v1365
    %v1419 = vmul.f32 %v1195, %v1370
    %v1420 = vmul.f32 %v1196, %v1375
    %v1421 = vmul.f32 %v1197, %v1380
    %v1422 = vmul.f32 %v1198, %v1385
    %v1423 = vmul.f32 %v1199, %v1390
    %v1424 = vadd.f32 %v1392, %v1393
    %v1425 = vadd.f32 %v1424, %v1394
    %v1426 = vadd.f32 %v1425, %v1395
    %v1427 = vadd.f32 %v1426, %v1396
    %v1428 = vadd.f32 %v1427, %v1397
    %v1429 = vadd.f32 %v1428, %v1398
    %v1430 = vadd.f32 %v1429, %v1399
    %v1431 = vadd.f32 %v1430, %v1400
    %v1432 = vadd.f32 %v1431, %v1401
    %v1433 = vadd.f32 %v1432, %v1402
    %v1434 = vadd.f32 %v1433, %v1403
    %v1435 = vadd.f32 %v1434, %v1404
    %v1436 = vadd.f32 %v1435, %v1405
    %v1437 = vadd.f32 %v1436, %v1406
    %v1438 = vadd.f32 %v1437, %v1407
    %v1439 = vadd.f32 %v1438, %v1408
    %v1440 = vadd.f32 %v1439, %v1409
    %v1441 = vadd.f32 %v1440, %v1410
    %v1442 = vadd.f32 %v1441, %v1411
    %v1443 = vadd.f32 %v1442, %v1412
    %v1444 = vadd.f32 %v1443, %v1413
    %v1445 = vadd.f32 %v1444, %v1414
    %v1446 = vadd.f32 %v1445, %v1415
    %v1447 = vadd.f32 %v1446, %v1416
    %v1448 = vadd.f32 %v1447, %v1417
    %v1449 = vadd.f32 %v1448, %v1418
    %v1450 = vadd.f32 %v1449, %v1419
    %v1451 = vadd.f32 %v1450, %v1420
    %v1452 = vadd.f32 %v1451, %v1421
    %v1453 = vadd.f32 %v1452, %v1422
    %v1454 = vadd.f32 %v1453, %v1423
    %v1455 = vrot.slane %v1454, 4
    %v1456 = vadd.f32 %v1454, %v1455
    %v1457 = vrot.slane %v1456, 2
    %v1458 = vadd.f32 %v1456, %v1457
    %v1459 = vrot.slane %v1458, 1
    %v1460 = vadd.f32 %v1458, %v1459
    %v1461 = vld [vmem:[#allocation2] sm:$0x1]
    %1463 = vset.pattern.permute.xlu0 0
    %1464 = vperm.xlu0 %1463, %v1461
    %v1465 = vpop.permute.xlu0 %1464
    %v1467 = vlaneseq
    %v1468 = vshrl.u32 %v1467, 7
    %v1469 = vsub.s32 0, %v1468
    %v1470 = vrot.slane %v1465, %v1469
    %v1471 = vadd.f32 %v1460, %v1470
    %1472 = vst [vmem:[#allocation3] sm:$0x1] %v1471
    // Predicated region
    $region30: #{tpu_custom_call.1} parent=1 // pred_check
      _
    $region31: #{tpu_custom_call.1} parent=1 // pred_check_branch
      %1474 = sbr.rel (0) target = $region33
    $region32: #{tpu_custom_call.1} parent=1 // pred_region
      %s1476 = ssub.s32 16, 16
      %1477 = vsyncadd [#allocation4], %s1476
      %s1479 = sshll.u32 [#allocation3], 4
      %s1480 = int_to_ptr.vmem [resolvable:$true] %s1479
      %1482 = dma.vmem_to_hbm [thread:$0]  %s1480, 16, %s7, [#allocation4]
    $region33: #{tpu_custom_call.1} parent=1 // pred_fallthru
      _
    // Predicated region
    $region34: #{tpu_custom_call.1} parent=1 // pred_check
      _
    $region35: #{tpu_custom_call.1} parent=1 // pred_check_branch
      %1484 = sbr.rel (0) target = $region37
    $region36: #{tpu_custom_call.1} parent=1 // pred_region
      %1485 = dma.done [#allocation4], 16
    $region37: #{tpu_custom_call.1} parent=1 // pred_fallthru
      _
    %1486 = vsyncpa [#allocation4], 1

</llo_original>
